<compile_context>
chip_gen: v7x
topology: tpu7x:2x2x1
jax: 0.10.0
libtpu: 0.0.40
codegen_flags: <defaults>
</compile_context>

<pallas_src>
import jax
import jax.numpy as jnp
from jax.experimental import pallas as pl
from jax.experimental.pallas import tpu as pltpu


# ----------------------------------------------------------------------------
# Kernels
# ----------------------------------------------------------------------------
def _concat_resnet_kernel_fullk(orig_ref, wt_ref, feat_ref, o_ref):
    """Fused block: ReLU(orig @ W^T + feature), full reduction dim per block.

    orig_ref: (tm, K), wt_ref: (K, tn), feat_ref / o_ref: (tm, tn).
    """
    acc = jnp.dot(orig_ref[...], wt_ref[...], preferred_element_type=jnp.float32)
    fused = acc + feat_ref[...].astype(jnp.float32)
    o_ref[...] = jnp.maximum(fused, 0.0).astype(o_ref.dtype)


def _concat_resnet_kernel_ktiled(orig_ref, wt_ref, feat_ref, o_ref, acc_ref):
    """K-tiled fallback for very large originDim.

    Grid = (M blocks, N blocks, K blocks); K is the innermost ("arbitrary")
    axis with an f32 accumulator held in VMEM scratch.
    """
    k = pl.program_id(2)

    @pl.when(k == 0)
    def _():
        acc_ref[...] = jnp.zeros_like(acc_ref)

    acc_ref[...] += jnp.dot(orig_ref[...], wt_ref[...],
                            preferred_element_type=jnp.float32)

    @pl.when(k == pl.num_programs(2) - 1)
    def _():
        fused = acc_ref[...] + feat_ref[...].astype(jnp.float32)
        o_ref[...] = jnp.maximum(fused, 0.0).astype(o_ref.dtype)


# ----------------------------------------------------------------------------
# Tiling helpers
# ----------------------------------------------------------------------------
def _pick_tile(dim, target, align):
    """Largest tile <= target that divides `dim` and is a multiple of `align`.

    Falls back to the full dimension (always a legal block shape)."""
    if dim <= target:
        return dim
    t = (target // align) * align
    while t >= align:
        if dim % t == 0:
            return t
        t -= align
    return dim


def _fullk_block_bytes(tm, tn, K, in_dt, w_dt, f_dt, o_dt):
    """Double-buffered VMEM footprint of one full-K grid step."""
    isz = jnp.dtype(in_dt).itemsize
    wsz = jnp.dtype(w_dt).itemsize
    fsz = jnp.dtype(f_dt).itemsize
    osz = jnp.dtype(o_dt).itemsize
    return 2 * (tm * K * isz + K * tn * wsz + tm * tn * fsz + tm * tn * osz)


def _ktiled_block_bytes(tm, tn, tk, in_dt, w_dt, f_dt, o_dt):
    isz = jnp.dtype(in_dt).itemsize
    wsz = jnp.dtype(w_dt).itemsize
    fsz = jnp.dtype(f_dt).itemsize
    osz = jnp.dtype(o_dt).itemsize
    dbl = 2 * (tm * tk * isz + tk * tn * wsz + tm * tn * fsz + tm * tn * osz)
    return dbl + tm * tn * 4  # + f32 accumulator scratch (single-buffered)


# ----------------------------------------------------------------------------
# Public wrapper
# ----------------------------------------------------------------------------
def concat_resnet_transform_v2(feature, origin_feature, weight_t,
                               *, tm=256, tn=512,
                               vmem_budget_bytes=12 * 1024 * 1024):
    """Fused ReLU(origin_feature @ weight_t + feature).

    feature:        (B, outDim)          -- residual branch
    origin_feature: (B, originDim)
    weight_t:       (originDim, outDim)  -- nn.Linear.weight PRE-TRANSPOSED
                    (transpose once at parameter setup, not per call).
    """
    B, K = origin_feature.shape
    K2, N = weight_t.shape
    assert K2 == K, "weight_t must be (originDim, outDim)"
    assert feature.shape == (B, N)

    out_dtype = feature.dtype
    dts = (origin_feature.dtype, weight_t.dtype, feature.dtype, out_dtype)

    # --- tile selection ------------------------------------------------------
    tm = _pick_tile(B, tm, 8)      # sublane axis: multiple of 8 (or full dim)
    tn = _pick_tile(N, tn, 128)    # lane axis:    multiple of 128 (or full dim)

    # Shrink tm while the double-buffered full-K working set blows the budget.
    while (_fullk_block_bytes(tm, tn, K, *dts) > vmem_budget_bytes and tm > 8):
        new_tm = tm // 2
        if new_tm % 8 != 0 or B % new_tm != 0:
            break
        tm = new_tm

    fullk_fits = _fullk_block_bytes(tm, tn, K, *dts) <= vmem_budget_bytes
    # K-tiled fallback is only legal if K can be split into 128-multiples.
    can_ktile = (K % 128 == 0) and (K > 128)

    cost = pl.CostEstimate(
        flops=2 * B * K * N,
        transcendentals=0,
        bytes_accessed=(
            B * K * jnp.dtype(origin_feature.dtype).itemsize
            + K * N * jnp.dtype(weight_t.dtype).itemsize
            + 2 * B * N * jnp.dtype(feature.dtype).itemsize),
    )

    if fullk_fits or not can_ktile:
        # ------------------------- full-K single-shot path -------------------
        # Keep at least 2 parallel blocks so both v7x TensorCores get work;
        # prefer splitting M so the output stays lane-dense.
        if (B // tm) * (N // tn) < 2:
            if tm % 16 == 0 and B % (tm // 2) == 0:
                tm //= 2
            elif tn % 256 == 0 and N % (tn // 2) == 0:
                tn //= 2

        grid = (B // tm, N // tn)  # M outermost: origin blocks stream once
        return pl.pallas_call(
            _concat_resnet_kernel_fullk,
            out_shape=jax.ShapeDtypeStruct((B, N), out_dtype),
            grid_spec=pltpu.PrefetchScalarGridSpec(
                num_scalar_prefetch=0,
                grid=grid,
                in_specs=[
                    pl.BlockSpec((tm, K), lambda i, j: (i, 0)),   # originFeature
                    pl.BlockSpec((K, tn), lambda i, j: (0, j)),   # W^T (full K)
                    pl.BlockSpec((tm, tn), lambda i, j: (i, j)),  # residual
                ],
                out_specs=pl.BlockSpec((tm, tn), lambda i, j: (i, j)),
            ),
            compiler_params=pltpu.CompilerParams(
                dimension_semantics=("parallel", "parallel")
            ),
            cost_estimate=cost,
        )(origin_feature, weight_t, feature)

    # ----------------------------- K-tiled fallback ---------------------------
    tk = _pick_tile(K, 1024, 128)
    while (_ktiled_block_bytes(tm, tn, tk, *dts) > vmem_budget_bytes
           and tk > 128 and (tk // 2) % 128 == 0 and K % (tk // 2) == 0):
        tk //= 2

    grid = (B // tm, N // tn, K // tk)  # reduction axis innermost
    return pl.pallas_call(
        _concat_resnet_kernel_ktiled,
        out_shape=jax.ShapeDtypeStruct((B, N), out_dtype),
        grid_spec=pltpu.PrefetchScalarGridSpec(
            num_scalar_prefetch=0,
            grid=grid,
            in_specs=[
                pl.BlockSpec((tm, tk), lambda i, j, k: (i, k)),   # originFeature
                pl.BlockSpec((tk, tn), lambda i, j, k: (k, j)),   # W^T
                pl.BlockSpec((tm, tn), lambda i, j, k: (i, j)),   # residual
            ],
            out_specs=pl.BlockSpec((tm, tn), lambda i, j, k: (i, j)),
            scratch_shapes=[pltpu.VMEM((tm, tn), jnp.float32)],
        ),
        compiler_params=pltpu.CompilerParams(
            dimension_semantics=("parallel", "parallel", "arbitrary")
        ),
        cost_estimate=cost,
    )(origin_feature, weight_t, feature)


# ----------------------------------------------------------------------------
# Reference + self-test
# ----------------------------------------------------------------------------
def _xavier_normal(key, out_dim, in_dim, gain=1.414, dtype=jnp.float32):
    # Matches torch.nn.init.xavier_normal_: std = gain * sqrt(2 / (fan_in + fan_out))
    std = gain * (2.0 / (in_dim + out_dim)) ** 0.5
    return std * jax.random.normal(key, (out_dim, in_dim), dtype=dtype)


def reference(feature, origin_feature, weight):
    return jnp.maximum(origin_feature @ weight.T + feature, 0.0)


if __name__ == "__main__":
    key = jax.random.PRNGKey(0)
    k_w, k_f, k_o = jax.random.split(key, 3)

    B = 256          # batch / number of nodes
    origin_dim = 128
    out_dim = 256

    weight = _xavier_normal(k_w, out_dim, origin_dim)                    # (outDim, originDim)
    feature = jax.random.normal(k_f, (B, out_dim), dtype=jnp.float32)    # (B, outDim)
    origin_feature = jax.random.normal(k_o, (B, origin_dim), dtype=jnp.float32)

    # One-time parameter setup: store the weight transposed for the kernel.
    weight_t = jnp.asarray(weight.T)  # (originDim, outDim)

    out = concat_resnet_transform_v2(feature, origin_feature, weight_t)
    out = jax.block_until_ready(out)

    ref = reference(feature, origin_feature, weight)
    assert out.shape == (B, out_dim)
    assert jnp.allclose(out, ref, atol=1e-4, rtol=1e-4), "mismatch vs reference"

    print("KERNEL_OK")
</pallas_src>

<mosaic_0001>
module attributes {stable_mosaic.version = 11 : i64} {
  func.func @_concat_resnet_kernel_fullk(%arg0: i32, %arg1: i32, %arg2: memref<128x128xf32, #tpu.memory_space<vmem>>, %arg3: memref<128x256xf32, #tpu.memory_space<vmem>>, %arg4: memref<128x256xf32, #tpu.memory_space<vmem>>, %arg5: memref<128x256xf32, #tpu.memory_space<vmem>>) attributes {dimension_semantics = [#tpu.dimension_semantics<parallel>, #tpu.dimension_semantics<parallel>], iteration_bounds = array<i64: 2, 1>, scalar_prefetch = 0 : i64, scratch_operands = 0 : i64, tpu.core_type = #tpu.core_type<tc>, window_params = [{transform_indices = @transform_0, window_bounds = array<i64: 128, 128>}, {transform_indices = @transform_1, window_bounds = array<i64: 128, 256>}, {transform_indices = @transform_2, window_bounds = array<i64: 128, 256>}, {transform_indices = @transform_3, window_bounds = array<i64: 128, 256>}]} {
    %c0 = arith.constant 0 : index
    %c0_0 = arith.constant 0 : index
    %0 = vector.load %arg2[%c0, %c0_0] : memref<128x128xf32, #tpu.memory_space<vmem>>, vector<128x128xf32>
    %c0_1 = arith.constant 0 : index
    %c0_2 = arith.constant 0 : index
    %1 = vector.load %arg3[%c0_1, %c0_2] : memref<128x256xf32, #tpu.memory_space<vmem>>, vector<128x256xf32>
    %cst = arith.constant dense<0.000000e+00> : vector<128x256xf32>
    %2 = tpu.matmul %0, %1, %cst {dimension_numbers = #tpu.dot_dimension_numbers<[1], [0], [0], [1], [0, 0, 1, 1], [], []>} : vector<128x128xf32>, vector<128x256xf32>, vector<128x256xf32> -> vector<128x256xf32>
    %c0_3 = arith.constant 0 : index
    %c0_4 = arith.constant 0 : index
    %3 = vector.load %arg4[%c0_3, %c0_4] : memref<128x256xf32, #tpu.memory_space<vmem>>, vector<128x256xf32>
    %4 = arith.addf %2, %3 : vector<128x256xf32>
    %cst_5 = arith.constant 0.000000e+00 : f32
    %5 = vector.broadcast %cst_5 : f32 to vector<128x256xf32>
    %6 = arith.maximumf %4, %5 : vector<128x256xf32>
    %c0_6 = arith.constant 0 : index
    %c0_7 = arith.constant 0 : index
    %7 = vector.load %arg5[%c0_6, %c0_7] : memref<128x256xf32, #tpu.memory_space<vmem>>, vector<128x256xf32>
    tpu.vector_store %arg5[%c0_6, %c0_7], %6 {strides = array<i32>} : memref<128x256xf32, #tpu.memory_space<vmem>>, vector<128x256xf32>,
    return
  }
  func.func @transform_0(%arg0: i32, %arg1: i32) -> (i32, i32) {
    %c0_i32 = arith.constant 0 : i32
    %c0_i32_0 = arith.constant 0 : i32
    return %arg0, %c0_i32 : i32, i32
  }
  func.func @transform_1(%arg0: i32, %arg1: i32) -> (i32, i32) {
    %c0_i32 = arith.constant 0 : i32
    %c0_i32_0 = arith.constant 0 : i32
    return %c0_i32, %arg1 : i32, i32
  }
  func.func @transform_2(%arg0: i32, %arg1: i32) -> (i32, i32) {
    %c0_i32 = arith.constant 0 : i32
    return %arg0, %arg1 : i32, i32
  }
  func.func @transform_3(%arg0: i32, %arg1: i32) -> (i32, i32) {
    %c0_i32 = arith.constant 0 : i32
    return %arg0, %arg1 : i32, i32
  }
}

</mosaic_0001>

<llo_original>
// kernel: tpu_custom_call.1
$region0: #{tpu_custom_call.1}
  #allocation0 [shape = 'u32[]', space=smem, size = 0x4, offset = 0x4, fixed_abs, tag = 'smem constant byte address 0x4 - core index']
  #allocation1 [shape = 'u32[144,128]{1,0:T(1,128)}', space=vmem, size = 0x12000, scoped, tag = 'internal scratch']
  %s0 = inlined_call_operand.hbm [shape: f32[256,128], index: 0, kind: input, shape index: {}]
  %s1 = inlined_call_operand.hbm [shape: f32[128,256], index: 1, kind: input, shape index: {}]
  %s2 = inlined_call_operand.hbm [shape: f32[256,256], index: 2, kind: input, shape index: {}]
  %s3 = inlined_call_operand.hbm [shape: f32[256,256], index: 3, kind: output, shape index: {}]
  %s4 = sld [smem:[#allocation0]]
  $region57: #{tpu_custom_call.1} parent=0
    _
  %s6 = ssub.s32 1, %s4
  %s7 = scalar_select 0, %s6, %s4
  $region1: #{tpu_custom_call.1} parent=0
    #allocation2 [shape = 'u8[131072]{0}', space=vmem, size = 0x20000, scoped, tag = 'input window, operand 0']
    #allocation3 [shape = 's32[2]{0}', space=sflag, size = 0x8, scoped, tag = 'scoped memory for tpu_custom_call.1']
    #allocation4 [shape = 's32[2]{0}', space=sflag, size = 0x8, scoped, tag = 'scoped memory for tpu_custom_call.1']
    #allocation5 [shape = 'u8[131072]{0}', space=vmem, size = 0x20000, scoped, tag = 'input window, operand 1, single buffered']
    #allocation6 [shape = 's32[1]{0}', space=sflag, size = 0x4, scoped, tag = 'scoped memory for tpu_custom_call.1']
    #allocation7 [shape = 'u8[262144]{0}', space=vmem, size = 0x40000, scoped, tag = 'input window, operand 2']
    #allocation8 [shape = 'u8[262144]{0}', space=vmem, size = 0x40000, scoped, tag = 'output window, operand 0']
    %8 = vsyncpa [#allocation3], 0
    %s9 = scalar_lea.sflag [#allocation3], 1
    %10 = vsyncpa %s9, 0
    %11 = vsyncpa [#allocation6], 0
    %12 = vsyncpa [#allocation4], 0
    %s13 = scalar_lea.sflag [#allocation4], 1
    %14 = vsyncpa %s13, 0
    loop: start=0, step=1, limit=4
    $region2: #{tpu_custom_call.1} parent=1 // loop_pre_header
      _
    $region3: #{tpu_custom_call.1} parent=1 // loop_header
      %s16 = sphi 0, %s20
      %p17 = scmp.ge.s32.totalorder %s16, 4
      %s23 = sphi 0, %s35
      %s24 = sphi 0, %s31
      %s25 = sphi 0, %s23
      %s26 = sphi 0, %s24
      %s27 = sphi 0, %s25
      %s28 = sphi 0, %s26
      %s38 = sphi 0, %s40
      %s41 = sphi 0, %s38
      %s42 = sphi 0, %s41
      %s58 = sphi 0, %s42
      %s64 = sphi 0, %s66
      %s67 = sphi 0, %s64
      %s68 = sphi 0, %s67
      %s84 = sphi 0, %s68
      %s92 = sphi 0, %s94
      %s95 = sphi 0, %s92
      %s96 = sphi 0, %s95
      %s112 = sphi 0, %s96
      %s120 = sphi 0, %s122
      %s123 = sphi 0, %s120
      %s124 = sphi 0, %s123
      %s140 = sphi 0, %s124
    $region4: #{tpu_custom_call.1} parent=1 // loop_header_branch
      %19 = sbr.rel (%p17) target = $region8
    $region5: #{tpu_custom_call.1} parent=1 // loop_body
      %s21 = ssub.s32 %s16, 1
      %s22 = ssub.s32 %s16, 2
      %s29 = sadd.s32 1, %s24
      %p30 = scmp.ge.s32.totalorder %s29, 1
      %s31 = scalar_select %p30, 0, %s29
      %s32 = sadd.s32 1, %s23
      %s33 = scalar_select %p30, %s32, %s23
      %p34 = scmp.ge.s32.totalorder %s33, 2
      %s35 = scalar_select %p34, 0, %s33
      %s36 = ssub.s32 %s23, %s35
      %p37 = scmp.eq.s32.totalorder %s36, 0
      %s39 = sadd.s32 %s38, 1
      %s40 = scalar_select %p37, %s38, %s39
      %p43 = pneg %p37
      %p44 = scmp.eq.s32.totalorder %s16, 1
      %p45 = por %p43, %p44
      %p46 = scmp.ne.s32.totalorder %s38, %s41
      %p47 = scmp.eq.s32.totalorder %s16, 0
      %p48 = por %p46, %p47
      %p49 = scmp.ne.s32.totalorder %s38, %s41
      %p50 = scmp.eq.s32.totalorder %s21, 1
      %p51 = por %p49, %p50
      %p52 = scmp.ne.s32.totalorder %s41, %s42
      %p53 = scmp.eq.s32.totalorder %s21, 0
      %p54 = por %p52, %p53
      %p55 = scmp.ne.s32.totalorder %s41, %s42
      %p56 = scmp.eq.s32.totalorder %s22, 1
      %p57 = por %p55, %p56
      %p59 = scmp.ne.s32.totalorder %s42, %s58
      %p60 = scmp.eq.s32.totalorder %s22, 0
      %p61 = por %p59, %p60
      %s62 = ssub.s32 %s24, %s31
      %p63 = scmp.eq.s32.totalorder %s62, 0
      %s65 = sadd.s32 %s64, 1
      %s66 = scalar_select %p63, %s64, %s65
      %p69 = pneg %p63
      %p70 = scmp.eq.s32.totalorder %s16, 1
      %p71 = por %p69, %p70
      %p72 = scmp.ne.s32.totalorder %s64, %s67
      %p73 = scmp.eq.s32.totalorder %s16, 0
      %p74 = por %p72, %p73
      %p75 = scmp.ne.s32.totalorder %s64, %s67
      %p76 = scmp.eq.s32.totalorder %s21, 1
      %p77 = por %p75, %p76
      %p78 = scmp.ne.s32.totalorder %s67, %s68
      %p79 = scmp.eq.s32.totalorder %s21, 0
      %p80 = por %p78, %p79
      %p81 = scmp.ne.s32.totalorder %s67, %s68
      %p82 = scmp.eq.s32.totalorder %s22, 1
      %p83 = por %p81, %p82
      %p85 = scmp.ne.s32.totalorder %s68, %s84
      %p86 = scmp.eq.s32.totalorder %s22, 0
      %p87 = por %p85, %p86
      %s88 = ssub.s32 %s23, %s35
      %s89 = ssub.s32 %s24, %s31
      %s90 = sor.u32 %s88, %s89
      %p91 = scmp.eq.s32.totalorder %s90, 0
      %s93 = sadd.s32 %s92, 1
      %s94 = scalar_select %p91, %s92, %s93
      %p97 = pneg %p91
      %p98 = scmp.eq.s32.totalorder %s16, 1
      %p99 = por %p97, %p98
      %p100 = scmp.ne.s32.totalorder %s92, %s95
      %p101 = scmp.eq.s32.totalorder %s16, 0
      %p102 = por %p100, %p101
      %p103 = scmp.ne.s32.totalorder %s92, %s95
      %p104 = scmp.eq.s32.totalorder %s21, 1
      %p105 = por %p103, %p104
      %p106 = scmp.ne.s32.totalorder %s95, %s96
      %p107 = scmp.eq.s32.totalorder %s21, 0
      %p108 = por %p106, %p107
      %p109 = scmp.ne.s32.totalorder %s95, %s96
      %p110 = scmp.eq.s32.totalorder %s22, 1
      %p111 = por %p109, %p110
      %p113 = scmp.ne.s32.totalorder %s96, %s112
      %p114 = scmp.eq.s32.totalorder %s22, 0
      %p115 = por %p113, %p114
      %s116 = ssub.s32 %s23, %s35
      %s117 = ssub.s32 %s24, %s31
      %s118 = sor.u32 %s116, %s117
      %p119 = scmp.eq.s32.totalorder %s118, 0
      %s121 = sadd.s32 %s120, 1
      %s122 = scalar_select %p119, %s120, %s121
      %p125 = pneg %p119
      %p126 = scmp.eq.s32.totalorder %s16, 1
      %p127 = por %p125, %p126
      %p128 = scmp.ne.s32.totalorder %s120, %s123
      %p129 = scmp.eq.s32.totalorder %s16, 0
      %p130 = por %p128, %p129
      %p131 = scmp.ne.s32.totalorder %s120, %s123
      %p132 = scmp.eq.s32.totalorder %s21, 1
      %p133 = por %p131, %p132
      %p134 = scmp.ne.s32.totalorder %s123, %s124
      %p135 = scmp.eq.s32.totalorder %s21, 0
      %p136 = por %p134, %p135
      %p137 = scmp.ne.s32.totalorder %s123, %s124
      %p138 = scmp.eq.s32.totalorder %s22, 1
      %p139 = por %p137, %p138
      %p141 = scmp.ne.s32.totalorder %s124, %s140
      %p142 = scmp.eq.s32.totalorder %s22, 0
      %p143 = por %p141, %p142
      %p144 = scmp.le.s32.totalorder 1, %s16
      %p145 = scmp.lt.s32.totalorder %s16, 3
      %p146 = pnand %p144, %p145
      %p147 = pneg %p146
      // Predicated region
      $region9: #{tpu_custom_call.1} parent=5 // pred_check
        _
      $region10: #{tpu_custom_call.1} parent=5 // pred_check_branch
        %149 = sbr.rel (%p146) target = $region12
      $region11: #{tpu_custom_call.1} parent=5 // pred_region
        %s150 = ssub.s32 %s16, 1
        // Predicated region
        $region13: #{tpu_custom_call.1} parent=11 // pred_check
          %p151 = pneg %p80
        $region14: #{tpu_custom_call.1} parent=11 // pred_check_branch
          %153 = sbr.rel (%p151) target = $region16
        $region15: #{tpu_custom_call.1} parent=11 // pred_region
          %s154 = smul.u32 2, %s26
          %s156 = ssub.s32 4096, 4096
          %157 = vsyncadd [#allocation6], %s156
          %s158 = smul.addr %s154, 128
          %s159 = scalar_lea.hbm %s1, %s158
          %s160 = sshll.u32 [#allocation5], 4
          %s161 = int_to_ptr.vmem [resolvable:$true] %s160
          %166 = dma.hbm_to_vmem [thread:$0]  %s159, 4096, %s161, [#allocation6], 256, 256, 16
        $region16: #{tpu_custom_call.1} parent=11 // pred_fallthru
          _
      $region12: #{tpu_custom_call.1} parent=5 // pred_fallthru
        _
      %p167 = scmp.lt.s32.totalorder %s16, 2
      // Predicated region
      $region17: #{tpu_custom_call.1} parent=5 // pred_check
        %p168 = pneg %p167
      $region18: #{tpu_custom_call.1} parent=5 // pred_check_branch
        %170 = sbr.rel (%p168) target = $region20
      $region19: #{tpu_custom_call.1} parent=5 // pred_region
        // Predicated region
        $region21: #{tpu_custom_call.1} parent=19 // pred_check
          %p171 = pneg %p48
        $region22: #{tpu_custom_call.1} parent=19 // pred_check_branch
          %173 = sbr.rel (%p171) target = $region24
        $region23: #{tpu_custom_call.1} parent=19 // pred_region
          %s174 = sand.u32 %s16, 1
          %s175 = scalar_lea.sflag [#allocation3], %s174
          %s176 = sand.u32 %s38, 1
          %s177 = smul.addr %s176, 128
          %s178 = scalar_lea.vmem [#allocation2], %s177
          %s179 = smul.u32 16, %s23
          %s181 = ssub.s32 2048, 2048
          %182 = vsyncadd %s175, %s181
          %s183 = smul.addr %s179, 128
          %s184 = scalar_lea.hbm %s0, %s183
          %s185 = sshll.u32 %s178, 4
          %s186 = int_to_ptr.vmem [resolvable:$true] %s185
          %191 = dma.hbm_to_vmem [thread:$0]  %s184, 2048, %s186, %s175, 128, 128, 8
        $region24: #{tpu_custom_call.1} parent=19 // pred_fallthru
          _
        // Predicated region
        $region25: #{tpu_custom_call.1} parent=19 // pred_check
          %p192 = pneg %p102
        $region26: #{tpu_custom_call.1} parent=19 // pred_check_branch
          %194 = sbr.rel (%p192) target = $region28
        $region27: #{tpu_custom_call.1} parent=19 // pred_region
          %s195 = sand.u32 %s16, 1
          %s196 = scalar_lea.sflag [#allocation3], %s195
          %s197 = sand.u32 %s92, 1
          %s198 = smul.addr %s197, 256
          %s199 = scalar_lea.vmem [#allocation7], %s198
          %s200 = smul.u32 16, %s23
          %s201 = smul.u32 2, %s24
          %s203 = ssub.s32 4096, 4096
          %204 = vsyncadd %s196, %s203
          %s205 = smul.addr %s200, 2
          %s206 = sadd.s32 %s201, %s205
          %s207 = smul.addr %s206, 128
          %s208 = scalar_lea.hbm %s2, %s207
          %s209 = sshll.u32 %s199, 4
          %s210 = int_to_ptr.vmem [resolvable:$true] %s209
          %215 = dma.hbm_to_vmem [thread:$0]  %s208, 4096, %s210, %s196, 256, 256, 16
        $region28: #{tpu_custom_call.1} parent=19 // pred_fallthru
          _
      $region20: #{tpu_custom_call.1} parent=5 // pred_fallthru
        _
      %p216 = scmp.le.s32.totalorder 1, %s16
      %p217 = scmp.lt.s32.totalorder %s16, 3
      %p218 = pnand %p216, %p217
      %p219 = pneg %p218
      // Predicated region
      $region29: #{tpu_custom_call.1} parent=5 // pred_check
        _
      $region30: #{tpu_custom_call.1} parent=5 // pred_check_branch
        %221 = sbr.rel (%p218) target = $region32
      $region31: #{tpu_custom_call.1} parent=5 // pred_region
        %s222 = ssub.s32 %s16, 1
        %s223 = sand.u32 %s21, 1
        %s224 = scalar_lea.sflag [#allocation3], %s223
        %s225 = sand.u32 %s41, 1
        %s226 = smul.addr %s225, 128
        %s227 = scalar_lea.vmem [#allocation2], %s226
        // Predicated region
        $region33: #{tpu_custom_call.1} parent=31 // pred_check
          %p228 = pneg %p54
        $region34: #{tpu_custom_call.1} parent=31 // pred_check_branch
          %230 = sbr.rel (%p228) target = $region36
        $region35: #{tpu_custom_call.1} parent=31 // pred_region
          %231 = dma.done %s224, 2048
        $region36: #{tpu_custom_call.1} parent=31 // pred_fallthru
          _
        // Predicated region
        $region37: #{tpu_custom_call.1} parent=31 // pred_check
          %p232 = pneg %p80
        $region38: #{tpu_custom_call.1} parent=31 // pred_check_branch
          %234 = sbr.rel (%p232) target = $region40
        $region39: #{tpu_custom_call.1} parent=31 // pred_region
          %235 = dma.done [#allocation6], 4096
        $region40: #{tpu_custom_call.1} parent=31 // pred_fallthru
          _
        %s236 = sand.u32 %s21, 1
        %s237 = scalar_lea.sflag [#allocation3], %s236
        %s238 = sand.u32 %s95, 1
        %s239 = smul.addr %s238, 256
        %s240 = scalar_lea.vmem [#allocation7], %s239
        // Predicated region
        $region41: #{tpu_custom_call.1} parent=31 // pred_check
          %p241 = pneg %p108
        $region42: #{tpu_custom_call.1} parent=31 // pred_check_branch
          %243 = sbr.rel (%p241) target = $region44
        $region43: #{tpu_custom_call.1} parent=31 // pred_region
          %244 = dma.done %s237, 4096
        $region44: #{tpu_custom_call.1} parent=31 // pred_fallthru
          _
        %s245 = sand.u32 %s21, 1
        %s246 = scalar_lea.sflag [#allocation3], %s245
        %s247 = sand.u32 %s41, 1
        %s248 = smul.addr %s247, 128
        %s249 = scalar_lea.vmem [#allocation2], %s248
        %p250 = pneg %p54
        %p251 = pneg %p51
        %p252 = pneg %p80
        %p253 = pneg %p77
        %s254 = sand.u32 %s21, 1
        %s255 = scalar_lea.sflag [#allocation3], %s254
        %s256 = sand.u32 %s95, 1
        %s257 = smul.addr %s256, 256
        %s258 = scalar_lea.vmem [#allocation7], %s257
        %p259 = pneg %p108
        %p260 = pneg %p105
        %p261 = pneg %p136
        %p262 = pneg %p133
        %s263 = sand.u32 %s123, 1
        %s264 = scalar_lea.sflag [#allocation4], %s263
        %s265 = sand.u32 %s123, 1
        %s266 = smul.addr %s265, 256
        %s267 = scalar_lea.vmem [#allocation8], %s266
        %s268 = smul.u32 16, %s25
        %s269 = smul.u32 2, %s26
        %s270 = smul.u32 16, %s25
        %s271 = smul.u32 2, %s26
        %s272 = smul.u32 16, %s25
        %s273 = smul.u32 2, %s26
        %v274 = vld [vmem:[%s227] sm:$0xff]
        %v275 = vld [vmem:[%s227 + $0x8] sm:$0xff]
        %v276 = vld [vmem:[%s227 + $0x10] sm:$0xff]
        %v277 = vld [vmem:[%s227 + $0x18] sm:$0xff]
        %v278 = vld [vmem:[%s227 + $0x20] sm:$0xff]
        %v279 = vld [vmem:[%s227 + $0x28] sm:$0xff]
        %v280 = vld [vmem:[%s227 + $0x30] sm:$0xff]
        %v281 = vld [vmem:[%s227 + $0x38] sm:$0xff]
        %v282 = vld [vmem:[%s227 + $0x40] sm:$0xff]
        %v283 = vld [vmem:[%s227 + $0x48] sm:$0xff]
        %v284 = vld [vmem:[%s227 + $0x50] sm:$0xff]
        %v285 = vld [vmem:[%s227 + $0x58] sm:$0xff]
        %v286 = vld [vmem:[%s227 + $0x60] sm:$0xff]
        %v287 = vld [vmem:[%s227 + $0x68] sm:$0xff]
        %v288 = vld [vmem:[%s227 + $0x70] sm:$0xff]
        %v289 = vld [vmem:[%s227 + $0x78] sm:$0xff]
        %v290 = vld [vmem:[#allocation5] sm:$0xff]
        %v291 = vld [vmem:[#allocation5 + $0x8] sm:$0xff]
        %v292 = vld [vmem:[#allocation5 + $0x10] sm:$0xff]
        %v293 = vld [vmem:[#allocation5 + $0x18] sm:$0xff]
        %v294 = vld [vmem:[#allocation5 + $0x20] sm:$0xff]
        %v295 = vld [vmem:[#allocation5 + $0x28] sm:$0xff]
        %v296 = vld [vmem:[#allocation5 + $0x30] sm:$0xff]
        %v297 = vld [vmem:[#allocation5 + $0x38] sm:$0xff]
        %v298 = vld [vmem:[#allocation5 + $0x40] sm:$0xff]
        %v299 = vld [vmem:[#allocation5 + $0x48] sm:$0xff]
        %v300 = vld [vmem:[#allocation5 + $0x50] sm:$0xff]
        %v301 = vld [vmem:[#allocation5 + $0x58] sm:$0xff]
        %v302 = vld [vmem:[#allocation5 + $0x60] sm:$0xff]
        %v303 = vld [vmem:[#allocation5 + $0x68] sm:$0xff]
        %v304 = vld [vmem:[#allocation5 + $0x70] sm:$0xff]
        %v305 = vld [vmem:[#allocation5 + $0x78] sm:$0xff]
        %v306 = vld [vmem:[#allocation5 + $0x80] sm:$0xff]
        %v307 = vld [vmem:[#allocation5 + $0x88] sm:$0xff]
        %v308 = vld [vmem:[#allocation5 + $0x90] sm:$0xff]
        %v309 = vld [vmem:[#allocation5 + $0x98] sm:$0xff]
        %v310 = vld [vmem:[#allocation5 + $0xa0] sm:$0xff]
        %v311 = vld [vmem:[#allocation5 + $0xa8] sm:$0xff]
        %v312 = vld [vmem:[#allocation5 + $0xb0] sm:$0xff]
        %v313 = vld [vmem:[#allocation5 + $0xb8] sm:$0xff]
        %v314 = vld [vmem:[#allocation5 + $0xc0] sm:$0xff]
        %v315 = vld [vmem:[#allocation5 + $0xc8] sm:$0xff]
        %v316 = vld [vmem:[#allocation5 + $0xd0] sm:$0xff]
        %v317 = vld [vmem:[#allocation5 + $0xd8] sm:$0xff]
        %v318 = vld [vmem:[#allocation5 + $0xe0] sm:$0xff]
        %v319 = vld [vmem:[#allocation5 + $0xe8] sm:$0xff]
        %v320 = vld [vmem:[#allocation5 + $0xf0] sm:$0xff]
        %v321 = vld [vmem:[#allocation5 + $0xf8] sm:$0xff]
        %v322 = vld [vmem:[%s240] sm:$0xff]
        %v323 = vld [vmem:[%s240 + $0x8] sm:$0xff]
        %v324 = vld [vmem:[%s240 + $0x10] sm:$0xff]
        %v325 = vld [vmem:[%s240 + $0x18] sm:$0xff]
        %v326 = vld [vmem:[%s240 + $0x20] sm:$0xff]
        %v327 = vld [vmem:[%s240 + $0x28] sm:$0xff]
        %v328 = vld [vmem:[%s240 + $0x30] sm:$0xff]
        %v329 = vld [vmem:[%s240 + $0x38] sm:$0xff]
        %v330 = vld [vmem:[%s240 + $0x40] sm:$0xff]
        %v331 = vld [vmem:[%s240 + $0x48] sm:$0xff]
        %v332 = vld [vmem:[%s240 + $0x50] sm:$0xff]
        %v333 = vld [vmem:[%s240 + $0x58] sm:$0xff]
        %v334 = vld [vmem:[%s240 + $0x60] sm:$0xff]
        %v335 = vld [vmem:[%s240 + $0x68] sm:$0xff]
        %v336 = vld [vmem:[%s240 + $0x70] sm:$0xff]
        %v337 = vld [vmem:[%s240 + $0x78] sm:$0xff]
        %v338 = vld [vmem:[%s240 + $0x80] sm:$0xff]
        %v339 = vld [vmem:[%s240 + $0x88] sm:$0xff]
        %v340 = vld [vmem:[%s240 + $0x90] sm:$0xff]
        %v341 = vld [vmem:[%s240 + $0x98] sm:$0xff]
        %v342 = vld [vmem:[%s240 + $0xa0] sm:$0xff]
        %v343 = vld [vmem:[%s240 + $0xa8] sm:$0xff]
        %v344 = vld [vmem:[%s240 + $0xb0] sm:$0xff]
        %v345 = vld [vmem:[%s240 + $0xb8] sm:$0xff]
        %v346 = vld [vmem:[%s240 + $0xc0] sm:$0xff]
        %v347 = vld [vmem:[%s240 + $0xc8] sm:$0xff]
        %v348 = vld [vmem:[%s240 + $0xd0] sm:$0xff]
        %v349 = vld [vmem:[%s240 + $0xd8] sm:$0xff]
        %v350 = vld [vmem:[%s240 + $0xe0] sm:$0xff]
        %v351 = vld [vmem:[%s240 + $0xe8] sm:$0xff]
        %v352 = vld [vmem:[%s240 + $0xf0] sm:$0xff]
        %v353 = vld [vmem:[%s240 + $0xf8] sm:$0xff]
        %354 = vmatprep.subr.mxu0 %v291
        %355 = vmatpush1.msra.mxu0 %v290
        %356 = vmatprep.subr.mxu0 %v293
        %357 = vmatpush1.msra.mxu0 %v292
        %358 = vmatprep.subr.mxu0 %v295
        %359 = vmatpush1.msra.mxu0 %v294
        %360 = vmatprep.subr.mxu0 %v297
        %361 = vmatpush1.msra.mxu0 %v296
        %362 = vmatprep.subr.mxu0 %v299
        %363 = vmatpush1.msra.mxu0 %v298
        %364 = vmatprep.subr.mxu0 %v301
        %365 = vmatpush1.msra.mxu0 %v300
        %366 = vmatprep.subr.mxu0 %v303
        %367 = vmatpush1.msra.mxu0 %v302
        %368 = vmatprep.subr.mxu0 %v305
        %369 = vmatpush1.msra.mxu0 %v304
        %370 = vmatprep.subr.mxu0 %v307
        %371 = vmatpush1.msra.mxu0 %v306
        %372 = vmatprep.subr.mxu0 %v309
        %373 = vmatpush1.msra.mxu0 %v308
        %374 = vmatprep.subr.mxu0 %v311
        %375 = vmatpush1.msra.mxu0 %v310
        %376 = vmatprep.subr.mxu0 %v313
        %377 = vmatpush1.msra.mxu0 %v312
        %378 = vmatprep.subr.mxu0 %v315
        %379 = vmatpush1.msra.mxu0 %v314
        %380 = vmatprep.subr.mxu0 %v317
        %381 = vmatpush1.msra.mxu0 %v316
        %382 = vmatprep.subr.mxu0 %v319
        %383 = vmatpush1.msra.mxu0 %v318
        %384 = vmatprep.subr.mxu0 %v321
        %385 = vmatpush1.msra.mxu0 %v320
        %386 = vmatprep.subr.mxu0 0.0
        %387 = vmatpush1.msra.mxu0 0.0
        %388 = vmatprep.subr.mxu0 0.0
        %389 = vmatpush1.msra.mxu0 0.0
        %390 = vmatprep.subr.mxu0 0.0
        %391 = vmatpush1.msra.mxu0 0.0
        %392 = vmatprep.subr.mxu0 0.0
        %393 = vmatpush1.msra.mxu0 0.0
        %394 = vmatprep.subr.mxu0 0.0
        %395 = vmatpush1.msra.mxu0 0.0
        %396 = vmatprep.subr.mxu0 0.0
        %397 = vmatpush1.msra.mxu0 0.0
        %398 = vmatprep.subr.mxu0 0.0
        %399 = vmatpush1.msra.mxu0 0.0
        %400 = vmatprep.subr.mxu0 0.0
        %401 = vmatpush1.msra.mxu0 0.0
        %402 = vmatprep.subr.mxu0 0.0
        %403 = vmatpush1.msra.mxu0 0.0
        %404 = vmatprep.subr.mxu0 0.0
        %405 = vmatpush1.msra.mxu0 0.0
        %406 = vmatprep.subr.mxu0 0.0
        %407 = vmatpush1.msra.mxu0 0.0
        %408 = vmatprep.subr.mxu0 0.0
        %409 = vmatpush1.msra.mxu0 0.0
        %410 = vmatprep.subr.mxu0 0.0
        %411 = vmatpush1.msra.mxu0 0.0
        %412 = vmatprep.subr.mxu0 0.0
        %413 = vmatpush1.msra.mxu0 0.0
        %414 = vmatprep.subr.mxu0 0.0
        %415 = vmatpush1.msra.mxu0 0.0
        %416 = vmatprep.subr.mxu0 0.0
        %417 = vmatpush1.msra.mxu0 0.0
        %418 = vmatprep.mubr.f32.mxu0 0.0
        %419 = vmatmul.mubr.f32.gmra.mrb[0].mxu0 %v274
        %v420 = vpop.f32.mrb[0].mxu0
        %v421 = vadd.f32 %v322, %v420
        %v422 = vpop.f32.mrb[0].mxu0
        %v423 = vadd.f32 %v323, %v422
        %424 = vmatprep.mubr.f32.mxu0 0.0
        %425 = vmatmul.mubr.f32.gmra.mrb[0].mxu0 %v275
        %v426 = vpop.f32.mrb[0].mxu0
        %v427 = vadd.f32 %v324, %v426
        %v428 = vpop.f32.mrb[0].mxu0
        %v429 = vadd.f32 %v325, %v428
        %430 = vmatprep.mubr.f32.mxu0 0.0
        %431 = vmatmul.mubr.f32.gmra.mrb[0].mxu0 %v276
        %v432 = vpop.f32.mrb[0].mxu0
        %v433 = vadd.f32 %v326, %v432
        %v434 = vpop.f32.mrb[0].mxu0
        %v435 = vadd.f32 %v327, %v434
        %436 = vmatprep.mubr.f32.mxu0 0.0
        %437 = vmatmul.mubr.f32.gmra.mrb[0].mxu0 %v277
        %v438 = vpop.f32.mrb[0].mxu0
        %v439 = vadd.f32 %v328, %v438
        %v440 = vpop.f32.mrb[0].mxu0
        %v441 = vadd.f32 %v329, %v440
        %442 = vmatprep.mubr.f32.mxu0 0.0
        %443 = vmatmul.mubr.f32.gmra.mrb[0].mxu0 %v278
        %v444 = vpop.f32.mrb[0].mxu0
        %v445 = vadd.f32 %v330, %v444
        %v446 = vpop.f32.mrb[0].mxu0
        %v447 = vadd.f32 %v331, %v446
        %448 = vmatprep.mubr.f32.mxu0 0.0
        %449 = vmatmul.mubr.f32.gmra.mrb[0].mxu0 %v279
        %v450 = vpop.f32.mrb[0].mxu0
        %v451 = vadd.f32 %v332, %v450
        %v452 = vpop.f32.mrb[0].mxu0
        %v453 = vadd.f32 %v333, %v452
        %454 = vmatprep.mubr.f32.mxu0 0.0
        %455 = vmatmul.mubr.f32.gmra.mrb[0].mxu0 %v280
        %v456 = vpop.f32.mrb[0].mxu0
        %v457 = vadd.f32 %v334, %v456
        %v458 = vpop.f32.mrb[0].mxu0
        %v459 = vadd.f32 %v335, %v458
        %460 = vmatprep.mubr.f32.mxu0 0.0
        %461 = vmatmul.mubr.f32.gmra.mrb[0].mxu0 %v281
        %v462 = vpop.f32.mrb[0].mxu0
        %v463 = vadd.f32 %v336, %v462
        %v464 = vpop.f32.mrb[0].mxu0
        %v465 = vadd.f32 %v337, %v464
        %466 = vmatprep.mubr.f32.mxu0 0.0
        %467 = vmatmul.mubr.f32.gmra.mrb[0].mxu0 %v282
        %v468 = vpop.f32.mrb[0].mxu0
        %v469 = vadd.f32 %v338, %v468
        %v470 = vpop.f32.mrb[0].mxu0
        %v471 = vadd.f32 %v339, %v470
        %472 = vmatprep.mubr.f32.mxu0 0.0
        %473 = vmatmul.mubr.f32.gmra.mrb[0].mxu0 %v283
        %v474 = vpop.f32.mrb[0].mxu0
        %v475 = vadd.f32 %v340, %v474
        %v476 = vpop.f32.mrb[0].mxu0
        %v477 = vadd.f32 %v341, %v476
        %478 = vmatprep.mubr.f32.mxu0 0.0
        %479 = vmatmul.mubr.f32.gmra.mrb[0].mxu0 %v284
        %v480 = vpop.f32.mrb[0].mxu0
        %v481 = vadd.f32 %v342, %v480
        %v482 = vpop.f32.mrb[0].mxu0
        %v483 = vadd.f32 %v343, %v482
        %484 = vmatprep.mubr.f32.mxu0 0.0
        %485 = vmatmul.mubr.f32.gmra.mrb[0].mxu0 %v285
        %v486 = vpop.f32.mrb[0].mxu0
        %v487 = vadd.f32 %v344, %v486
        %v488 = vpop.f32.mrb[0].mxu0
        %v489 = vadd.f32 %v345, %v488
        %490 = vmatprep.mubr.f32.mxu0 0.0
        %491 = vmatmul.mubr.f32.gmra.mrb[0].mxu0 %v286
        %v492 = vpop.f32.mrb[0].mxu0
        %v493 = vadd.f32 %v346, %v492
        %v494 = vpop.f32.mrb[0].mxu0
        %v495 = vadd.f32 %v347, %v494
        %496 = vmatprep.mubr.f32.mxu0 0.0
        %497 = vmatmul.mubr.f32.gmra.mrb[0].mxu0 %v287
        %v498 = vpop.f32.mrb[0].mxu0
        %v499 = vadd.f32 %v348, %v498
        %v500 = vpop.f32.mrb[0].mxu0
        %v501 = vadd.f32 %v349, %v500
        %502 = vmatprep.mubr.f32.mxu0 0.0
        %503 = vmatmul.mubr.f32.gmra.mrb[0].mxu0 %v288
        %v504 = vpop.f32.mrb[0].mxu0
        %v505 = vadd.f32 %v350, %v504
        %v506 = vpop.f32.mrb[0].mxu0
        %v507 = vadd.f32 %v351, %v506
        %508 = vmatprep.mubr.f32.mxu0 0.0
        %509 = vmatmul.mubr.f32.gmra.mrb[0].mxu0 %v289
        %v510 = vpop.f32.mrb[0].mxu0
        %v511 = vadd.f32 %v352, %v510
        %v512 = vpop.f32.mrb[0].mxu0
        %v513 = vadd.f32 %v353, %v512
        %514 = vdwg.mxu0
        %v515 = vmax.f32 %v421, 0.0
        %v516 = vmax.f32 %v423, 0.0
        %v517 = vmax.f32 %v427, 0.0
        %v518 = vmax.f32 %v429, 0.0
        %v519 = vmax.f32 %v433, 0.0
        %v520 = vmax.f32 %v435, 0.0
        %v521 = vmax.f32 %v439, 0.0
        %v522 = vmax.f32 %v441, 0.0
        %v523 = vmax.f32 %v445, 0.0
        %v524 = vmax.f32 %v447, 0.0
        %v525 = vmax.f32 %v451, 0.0
        %v526 = vmax.f32 %v453, 0.0
        %v527 = vmax.f32 %v457, 0.0
        %v528 = vmax.f32 %v459, 0.0
        %v529 = vmax.f32 %v463, 0.0
        %v530 = vmax.f32 %v465, 0.0
        %v531 = vmax.f32 %v469, 0.0
        %v532 = vmax.f32 %v471, 0.0
        %v533 = vmax.f32 %v475, 0.0
        %v534 = vmax.f32 %v477, 0.0
        %v535 = vmax.f32 %v481, 0.0
        %v536 = vmax.f32 %v483, 0.0
        %v537 = vmax.f32 %v487, 0.0
        %v538 = vmax.f32 %v489, 0.0
        %v539 = vmax.f32 %v493, 0.0
        %v540 = vmax.f32 %v495, 0.0
        %v541 = vmax.f32 %v499, 0.0
        %v542 = vmax.f32 %v501, 0.0
        %v543 = vmax.f32 %v505, 0.0
        %v544 = vmax.f32 %v507, 0.0
        %v545 = vmax.f32 %v511, 0.0
        %v546 = vmax.f32 %v513, 0.0
        %547 = vst [vmem:[%s267] sm:$0xff] %v515
        %548 = vst [vmem:[%s267 + $0x8] sm:$0xff] %v516
        %549 = vst [vmem:[%s267 + $0x10] sm:$0xff] %v517
        %550 = vst [vmem:[%s267 + $0x18] sm:$0xff] %v518
        %551 = vst [vmem:[%s267 + $0x20] sm:$0xff] %v519
        %552 = vst [vmem:[%s267 + $0x28] sm:$0xff] %v520
        %553 = vst [vmem:[%s267 + $0x30] sm:$0xff] %v521
        %554 = vst [vmem:[%s267 + $0x38] sm:$0xff] %v522
        %555 = vst [vmem:[%s267 + $0x40] sm:$0xff] %v523
        %556 = vst [vmem:[%s267 + $0x48] sm:$0xff] %v524
        %557 = vst [vmem:[%s267 + $0x50] sm:$0xff] %v525
        %558 = vst [vmem:[%s267 + $0x58] sm:$0xff] %v526
        %559 = vst [vmem:[%s267 + $0x60] sm:$0xff] %v527
        %560 = vst [vmem:[%s267 + $0x68] sm:$0xff] %v528
        %561 = vst [vmem:[%s267 + $0x70] sm:$0xff] %v529
        %562 = vst [vmem:[%s267 + $0x78] sm:$0xff] %v530
        %563 = vst [vmem:[%s267 + $0x80] sm:$0xff] %v531
        %564 = vst [vmem:[%s267 + $0x88] sm:$0xff] %v532
        %565 = vst [vmem:[%s267 + $0x90] sm:$0xff] %v533
        %566 = vst [vmem:[%s267 + $0x98] sm:$0xff] %v534
        %567 = vst [vmem:[%s267 + $0xa0] sm:$0xff] %v535
        %568 = vst [vmem:[%s267 + $0xa8] sm:$0xff] %v536
        %569 = vst [vmem:[%s267 + $0xb0] sm:$0xff] %v537
        %570 = vst [vmem:[%s267 + $0xb8] sm:$0xff] %v538
        %571 = vst [vmem:[%s267 + $0xc0] sm:$0xff] %v539
        %572 = vst [vmem:[%s267 + $0xc8] sm:$0xff] %v540
        %573 = vst [vmem:[%s267 + $0xd0] sm:$0xff] %v541
        %574 = vst [vmem:[%s267 + $0xd8] sm:$0xff] %v542
        %575 = vst [vmem:[%s267 + $0xe0] sm:$0xff] %v543
        %576 = vst [vmem:[%s267 + $0xe8] sm:$0xff] %v544
        %577 = vst [vmem:[%s267 + $0xf0] sm:$0xff] %v545
        %578 = vst [vmem:[%s267 + $0xf8] sm:$0xff] %v546
        %s579 = sand.u32 %s123, 1
        %s580 = scalar_lea.sflag [#allocation4], %s579
        %s581 = sand.u32 %s123, 1
        %s582 = smul.addr %s581, 256
        %s583 = scalar_lea.vmem [#allocation8], %s582
        // Predicated region
        $region45: #{tpu_custom_call.1} parent=31 // pred_check
          %p584 = pneg %p133
        $region46: #{tpu_custom_call.1} parent=31 // pred_check_branch
          %586 = sbr.rel (%p584) target = $region48
        $region47: #{tpu_custom_call.1} parent=31 // pred_region
          %s587 = smul.u32 16, %s25
          %s588 = smul.u32 2, %s26
          %s590 = ssub.s32 4096, 4096
          %591 = vsyncadd %s580, %s590
          %s592 = smul.addr %s587, 2
          %s593 = sadd.s32 %s588, %s592
          %s594 = smul.addr %s593, 128
          %s595 = scalar_lea.hbm %s3, %s594
          %s596 = sshll.u32 %s583, 4
          %s597 = int_to_ptr.vmem [resolvable:$true] %s596
          %602 = dma.vmem_to_hbm [thread:$0]  %s597, 4096, %s595, %s580, 256, 256, 16
        $region48: #{tpu_custom_call.1} parent=31 // pred_fallthru
          _
      $region32: #{tpu_custom_call.1} parent=5 // pred_fallthru
        _
      %p603 = scmp.le.s32.totalorder 2, %s16
      // Predicated region
      $region49: #{tpu_custom_call.1} parent=5 // pred_check
        %p604 = pneg %p603
      $region50: #{tpu_custom_call.1} parent=5 // pred_check_branch
        %606 = sbr.rel (%p604) target = $region52
      $region51: #{tpu_custom_call.1} parent=5 // pred_region
        %s607 = ssub.s32 %s16, 2
        // Predicated region
        $region53: #{tpu_custom_call.1} parent=51 // pred_check
          %p608 = pneg %p139
        $region54: #{tpu_custom_call.1} parent=51 // pred_check_branch
          %610 = sbr.rel (%p608) target = $region56
        $region55: #{tpu_custom_call.1} parent=51 // pred_region
          %s611 = sand.u32 %s124, 1
          %s612 = scalar_lea.sflag [#allocation4], %s611
          %s613 = sand.u32 %s124, 1
          %s614 = smul.addr %s613, 256
          %s615 = scalar_lea.vmem [#allocation8], %s614
          %616 = dma.done %s612, 4096
        $region56: #{tpu_custom_call.1} parent=51 // pred_fallthru
          _
      $region52: #{tpu_custom_call.1} parent=5 // pred_fallthru
        _
    $region6: #{tpu_custom_call.1} parent=1 // loop_footer
      %s20 = sadd.s32 1, %s16
    $region7: #{tpu_custom_call.1} parent=1 // loop_footer_branch
      %15 = sbr.rel target = $region3
    $region8: #{tpu_custom_call.1} parent=1 // loop_exit
      _
    %617 = vsyncpa [#allocation3], 1
    %s618 = scalar_lea.sflag [#allocation3], 1
    %619 = vsyncpa %s618, 1
    %620 = vsyncpa [#allocation6], 1
    %621 = vsyncpa [#allocation4], 1
    %s622 = scalar_lea.sflag [#allocation4], 1
    %623 = vsyncpa %s622, 1

</llo_original>
